<compile_context>
chip_gen: v6e
topology: v6e:2x2x1
jax: 0.10.0
libtpu: 0.0.40
codegen_flags: <defaults>
</compile_context>

<pallas_src>
import functools
import math

import numpy as np

import jax
import jax.numpy as jnp
from jax.experimental import pallas as pl
from jax.experimental.pallas import tpu as pltpu


def _cdiv(a: int, b: int) -> int:
    return (a + b - 1) // b


def _round_up(a: int, b: int) -> int:
    return _cdiv(a, b) * b


# ---- fused sincos constants ------------------------------------------------------
# Cody-Waite split of pi/2: the high part has 17 significant bits (7 trailing mantissa
# zeros), so k * PI2_HI is exact in f32 for |k| < 128, i.e. |proj| < ~200.  For the
# normalized Fourier encoding (positions in [0,1], weight ~ N(0,1)) |proj| is ~tens,
# so the reduction error stays ~1e-7; beyond |proj| ~ 200 accuracy degrades gracefully.
_TWO_OVER_PI = float(np.float32(2.0 / math.pi))
_PI2_HI = 1.5707855224609375
_PI2_MID = float(np.float32(math.pi / 2 - _PI2_HI))
_PI2_LO = float(np.float32(math.pi / 2 - _PI2_HI - _PI2_MID))

# cephes sinf/cosf minimax coefficients for |r| <= pi/4.
_S1 = -1.6666654611e-01
_S2 = 8.3321608736e-03
_S3 = -1.9515295891e-04
_C1 = -0.5
_C2 = 4.166664568298827e-02
_C3 = -1.388731625493765e-03
_C4 = 2.443315711809948e-05


def _fourier_kernel(x_ref, w_ref, o_ref, *, fh: int, scaling: float):
    # x_ref: (tm, D)  f32  positions tile (2*pi / spatial_range already folded into w)
    # w_ref: (D, Fh)  f32  folded projection matrix (resident; DMA'd once)
    # o_ref: (tm, 2*Fh)    output tile = [sin(proj), cos(proj)] * scaling
    #
    # Degenerate K=D matmul: free filler in the vector-extended slot (kernel is
    # VALU-bound on the sincos below).
    proj = jnp.dot(x_ref[...], w_ref[...], preferred_element_type=jnp.float32)

    # --- shared Cody-Waite range reduction (one reduction feeds both sin and cos) ---
    kf = jnp.floor(proj * _TWO_OVER_PI + 0.5)
    r = ((proj - kf * _PI2_HI) - kf * _PI2_MID) - kf * _PI2_LO
    r2 = r * r

    # Polynomials with the final out_features**-0.5 scaling folded into every
    # coefficient (exact algebraic distribution of the scalar).
    sp = r * (scaling + r2 * (_S1 * scaling + r2 * (_S2 * scaling + r2 * (_S3 * scaling))))
    cp = scaling + r2 * (_C1 * scaling
                         + r2 * (_C2 * scaling
                                 + r2 * (_C3 * scaling + r2 * (_C4 * scaling))))

    # Quadrant selection:
    #   sin(x): q=0 -> +sp, 1 -> +cp, 2 -> -sp, 3 -> -cp
    #   cos(x): q=0 -> +cp, 1 -> -sp, 2 -> -cp, 3 -> +sp
    q = kf.astype(jnp.int32)
    q0 = (q & 1) == 1
    q1 = (q & 2) == 2
    base_sin = jnp.where(q0, cp, sp)
    base_cos = jnp.where(q0, sp, cp)
    sin_out = jnp.where(q1, -base_sin, base_sin)
    cos_out = jnp.where(q0 ^ q1, -base_cos, base_cos)

    # Direct half-writes into the final lane positions (no concatenate temp).
    # With Fh a multiple of 128 both stores are lane-aligned (unmasked vst).
    o_ref[:, :fh] = sin_out.astype(o_ref.dtype)
    o_ref[:, fh:] = cos_out.astype(o_ref.dtype)


def fourier_pos_encoding(positions, weight, input_spatial_range=None, *,
                         normalize: bool = True, tile_m: int = 2048):
    """positions: [..., in_features]; weight: [in_features, out_features//2]."""
    *lead, D = positions.shape
    Dw, Fh = weight.shape
    assert D == Dw, "positions last dim must equal in_features"
    Fout = 2 * Fh
    scaling = float(Fout) ** -0.5
    out_dtype = positions.dtype

    # Fold normalization and 2*pi into the (tiny) projection matrix:
    #   ((p / r) * 2*pi) @ W  ==  p @ ((2*pi / r)[:, None] * W)
    w = weight.astype(jnp.float32) * (2.0 * jnp.pi)
    if normalize:
        assert input_spatial_range is not None
        r = jnp.asarray(input_spatial_range, jnp.float32).reshape(-1)
        assert r.size in (1, D), (
            "spatial range is folded into the projection weight; "
            "it must be a scalar or per-coordinate [in_features] vector")
        # TODO(synk): a per-row input_spatial_range (varying over leading dims) would
        # need to be passed as an extra tiled kernel input instead of folded here.
        w = w / jnp.broadcast_to(r, (D,))[:, None]

    M = 1
    for s in lead:
        M *= s
    if M == 0:
        return jnp.zeros((*lead, Fout), out_dtype)

    # Tile selection: big tiles amortize per-step overhead; pick the tile so the
    # "parallel" grid has an even number of steps (2 TensorCores on v7x) when M allows.
    num_pairs = max(1, _cdiv(M, 2 * tile_m))
    tm = max(8, _round_up(_cdiv(M, 2 * num_pairs), 8))
    grid = _cdiv(M, tm)

    x = positions.reshape(M, D).astype(jnp.float32)
    Mp = grid * tm
    if Mp != M:
        # Cheap (4*D bytes/row) input pad so every input block is fully valid.  The
        # OUTPUT stays at (M, Fout): Pallas masks the ragged last block's writeback,
        # so no post-kernel slice copy is needed.
        x = jnp.pad(x, ((0, Mp - M), (0, 0)))

    # Explicit VMEM budget with honest lane padding: the (tm, D) tile occupies
    # tm x round_up(D, 128) lanes in VMEM regardless of D.
    def _lanes(n: int) -> int:
        return _round_up(max(n, 1), 128)

    out_itemsize = jnp.dtype(out_dtype).itemsize
    x_tile_bytes = 4 * tm * _lanes(D)
    o_tile_bytes = out_itemsize * tm * _lanes(Fout)
    w_bytes = 4 * _round_up(D, 8) * _lanes(Fh)
    vmem_limit = int(min(64 << 20,
                         max(8 << 20,
                             2 * (2 * (x_tile_bytes + o_tile_bytes)) + 2 * w_bytes)))

    cost = pl.CostEstimate(
        # matmul + ~30 VALU ops/elem for the fused-sincos polynomial + selects
        flops=2 * M * D * Fh + 30 * M * Fout,
        transcendentals=0,  # sincos is hand-rolled on the VPU (no EUP calls)
        bytes_accessed=4 * M * D + 4 * D * Fh + out_itemsize * M * Fout,
    )

    out = pl.pallas_call(
        functools.partial(_fourier_kernel, fh=Fh, scaling=scaling),
        out_shape=jax.ShapeDtypeStruct((M, Fout), out_dtype),
        grid=(grid,),
        in_specs=[
            pl.BlockSpec((tm, D), lambda m: (m, 0)),   # positions tile
            pl.BlockSpec((D, Fh), lambda m: (0, 0)),   # resident folded projection
        ],
        out_specs=pl.BlockSpec((tm, Fout), lambda m: (m, 0)),
        compiler_params=pltpu.CompilerParams(
            dimension_semantics=("parallel",),
            vmem_limit_bytes=vmem_limit,
        ),
        cost_estimate=cost,
    )(x, w)

    return out.reshape(*lead, Fout)


def _reference(positions, weight, spatial_range, normalize=True):
    """Pure-JAX mirror of the PyTorch forward."""
    p = positions
    if normalize:
        p = p / spatial_range
    p = p * (2.0 * jnp.pi)
    proj = p @ weight
    out = jnp.concatenate([jnp.sin(proj), jnp.cos(proj)], axis=-1)
    return out * (2 * weight.shape[1]) ** -0.5


if __name__ == "__main__":
    # Module config: in_features=2 (x, y coords), out_features=256 (Fh=128 -> both
    # half-writes lane-dense), normalize=True with a per-coordinate spatial range.
    in_features = 2
    out_features = 256

    key = jax.random.PRNGKey(0)
    k_w, k_x, k_x2 = jax.random.split(key, 3)

    # reset_parameters(): weight ~ N(0, 1), shape [in_features, out_features // 2]
    weight = jax.random.normal(k_w, (in_features, out_features // 2), jnp.float32)
    spatial_range = jnp.array([16.0, 16.0], jnp.float32)

    # Case 1: M divisible by the tile (grid of 2 even steps).
    B, N = 2, 128
    positions = jax.random.uniform(k_x, (B, N, in_features), jnp.float32,
                                   minval=0.0, maxval=16.0)
    out = jax.block_until_ready(
        fourier_pos_encoding(positions, weight, spatial_range, normalize=True))
    ref = _reference(positions, weight, spatial_range, normalize=True)
    assert out.shape == (B, N, out_features)
    assert out.dtype == positions.dtype
    err1 = float(jnp.abs(out - ref).max())
    assert jnp.allclose(out, ref, atol=2e-5, rtol=2e-5), err1

    # Case 2: ragged M (exercises the masked last-block writeback, no slice copy).
    positions2 = jax.random.uniform(k_x2, (1, 100, in_features), jnp.float32,
                                    minval=0.0, maxval=16.0)
    out2 = jax.block_until_ready(
        fourier_pos_encoding(positions2, weight, spatial_range, normalize=True))
    ref2 = _reference(positions2, weight, spatial_range, normalize=True)
    assert out2.shape == (1, 100, out_features)
    err2 = float(jnp.abs(out2 - ref2).max())
    assert jnp.allclose(out2, ref2, atol=2e-5, rtol=2e-5), err2

    print("KERNEL_OK")
</pallas_src>

<mosaic_0001>
module attributes {stable_mosaic.version = 11 : i64} {
  func.func @_fourier_kernel(%arg0: i32, %arg1: memref<128x2xf32, #tpu.memory_space<vmem>>, %arg2: memref<2x128xf32, #tpu.memory_space<vmem>>, %arg3: memref<128x256xf32, #tpu.memory_space<vmem>>) attributes {dimension_semantics = [#tpu.dimension_semantics<parallel>], iteration_bounds = array<i64: 2>, scalar_prefetch = 0 : i64, scratch_operands = 0 : i64, tpu.core_type = #tpu.core_type<tc>, window_params = [{transform_indices = @transform_0, window_bounds = array<i64: 128, 2>}, {pipeline_mode = #tpu.pipeline_mode<synchronous>, transform_indices = @transform_1, window_bounds = array<i64: 2, 128>}, {transform_indices = @transform_2, window_bounds = array<i64: 128, 256>}]} {
    %c0 = arith.constant 0 : index
    %c0_0 = arith.constant 0 : index
    %0 = vector.load %arg1[%c0, %c0_0] : memref<128x2xf32, #tpu.memory_space<vmem>>, vector<128x2xf32>
    %c0_1 = arith.constant 0 : index
    %c0_2 = arith.constant 0 : index
    %1 = vector.load %arg2[%c0_1, %c0_2] : memref<2x128xf32, #tpu.memory_space<vmem>>, vector<2x128xf32>
    %cst = arith.constant dense<0.000000e+00> : vector<128x128xf32>
    %2 = tpu.matmul %0, %1, %cst {dimension_numbers = #tpu.dot_dimension_numbers<[1], [0], [0], [1], [0, 0, 1, 1], [], []>} : vector<128x2xf32>, vector<2x128xf32>, vector<128x128xf32> -> vector<128x128xf32>
    %cst_3 = arith.constant 0.636619746 : f32
    %3 = vector.broadcast %cst_3 : f32 to vector<128x128xf32>
    %4 = arith.mulf %2, %3 : vector<128x128xf32>
    %cst_4 = arith.constant 5.000000e-01 : f32
    %5 = vector.broadcast %cst_4 : f32 to vector<128x128xf32>
    %6 = arith.addf %4, %5 : vector<128x128xf32>
    %7 = math.floor %6 : vector<128x128xf32>
    %cst_5 = arith.constant 1.57078552 : f32
    %8 = vector.broadcast %cst_5 : f32 to vector<128x128xf32>
    %9 = arith.mulf %7, %8 : vector<128x128xf32>
    %10 = arith.subf %2, %9 : vector<128x128xf32>
    %cst_6 = arith.constant 1.08043341E-5 : f32
    %11 = vector.broadcast %cst_6 : f32 to vector<128x128xf32>
    %12 = arith.mulf %7, %11 : vector<128x128xf32>
    %13 = arith.subf %10, %12 : vector<128x128xf32>
    %cst_7 = arith.constant -1.65201186E-13 : f32
    %14 = vector.broadcast %cst_7 : f32 to vector<128x128xf32>
    %15 = arith.mulf %7, %14 : vector<128x128xf32>
    %16 = arith.subf %13, %15 : vector<128x128xf32>
    %17 = arith.mulf %16, %16 : vector<128x128xf32>
    %cst_8 = arith.constant -1.21970597E-5 : f32
    %18 = vector.broadcast %cst_8 : f32 to vector<128x128xf32>
    %19 = arith.mulf %17, %18 : vector<128x128xf32>
    %cst_9 = arith.constant 5.20760077E-4 : f32
    %20 = vector.broadcast %cst_9 : f32 to vector<128x128xf32>
    %21 = arith.addf %20, %19 : vector<128x128xf32>
    %22 = arith.mulf %17, %21 : vector<128x128xf32>
    %cst_10 = arith.constant -0.0104166595 : f32
    %23 = vector.broadcast %cst_10 : f32 to vector<128x128xf32>
    %24 = arith.addf %23, %22 : vector<128x128xf32>
    %25 = arith.mulf %17, %24 : vector<128x128xf32>
    %cst_11 = arith.constant 6.250000e-02 : f32
    %26 = vector.broadcast %cst_11 : f32 to vector<128x128xf32>
    %27 = arith.addf %26, %25 : vector<128x128xf32>
    %28 = arith.mulf %16, %27 : vector<128x128xf32>
    %cst_12 = arith.constant 1.5270723E-6 : f32
    %29 = vector.broadcast %cst_12 : f32 to vector<128x128xf32>
    %30 = arith.mulf %17, %29 : vector<128x128xf32>
    %cst_13 = arith.constant -8.67957278E-5 : f32
    %31 = vector.broadcast %cst_13 : f32 to vector<128x128xf32>
    %32 = arith.addf %31, %30 : vector<128x128xf32>
    %33 = arith.mulf %17, %32 : vector<128x128xf32>
    %cst_14 = arith.constant 0.00260416535 : f32
    %34 = vector.broadcast %cst_14 : f32 to vector<128x128xf32>
    %35 = arith.addf %34, %33 : vector<128x128xf32>
    %36 = arith.mulf %17, %35 : vector<128x128xf32>
    %cst_15 = arith.constant -3.125000e-02 : f32
    %37 = vector.broadcast %cst_15 : f32 to vector<128x128xf32>
    %38 = arith.addf %37, %36 : vector<128x128xf32>
    %39 = arith.mulf %17, %38 : vector<128x128xf32>
    %cst_16 = arith.constant 6.250000e-02 : f32
    %40 = vector.broadcast %cst_16 : f32 to vector<128x128xf32>
    %41 = arith.addf %40, %39 : vector<128x128xf32>
    %42 = arith.fptosi %7 : vector<128x128xf32> to vector<128x128xi32>
    %c1_i32 = arith.constant 1 : i32
    %43 = vector.broadcast %c1_i32 : i32 to vector<128x128xi32>
    %44 = arith.andi %42, %43 : vector<128x128xi32>
    %c1_i32_17 = arith.constant 1 : i32
    %45 = vector.broadcast %c1_i32_17 : i32 to vector<128x128xi32>
    %46 = arith.cmpi eq, %44, %45 : vector<128x128xi32>
    %c2_i32 = arith.constant 2 : i32
    %47 = vector.broadcast %c2_i32 : i32 to vector<128x128xi32>
    %48 = arith.andi %42, %47 : vector<128x128xi32>
    %c2_i32_18 = arith.constant 2 : i32
    %49 = vector.broadcast %c2_i32_18 : i32 to vector<128x128xi32>
    %50 = arith.cmpi eq, %48, %49 : vector<128x128xi32>
    %51 = arith.select %46, %41, %28 : vector<128x128xi1>, vector<128x128xf32>
    %52 = arith.select %46, %28, %41 : vector<128x128xi1>, vector<128x128xf32>
    %cst_19 = arith.constant 0.000000e+00 : f32
    %53 = vector.broadcast %cst_19 : f32 to vector<128x128xf32>
    %54 = arith.subf %53, %51 : vector<128x128xf32>
    %55 = arith.select %50, %54, %51 : vector<128x128xi1>, vector<128x128xf32>
    %56 = arith.xori %46, %50 : vector<128x128xi1>
    %cst_20 = arith.constant 0.000000e+00 : f32
    %57 = vector.broadcast %cst_20 : f32 to vector<128x128xf32>
    %58 = arith.subf %57, %52 : vector<128x128xf32>
    %59 = arith.select %56, %58, %52 : vector<128x128xi1>, vector<128x128xf32>
    %c0_21 = arith.constant 0 : index
    %c0_22 = arith.constant 0 : index
    %60 = vector.load %arg3[%c0_21, %c0_22] : memref<128x256xf32, #tpu.memory_space<vmem>>, vector<128x128xf32>
    tpu.vector_store %arg3[%c0_21, %c0_22], %55 {strides = array<i32>} : memref<128x256xf32, #tpu.memory_space<vmem>>, vector<128x128xf32>,
    %c0_23 = arith.constant 0 : index
    %c128 = arith.constant 128 : index
    %61 = vector.load %arg3[%c0_23, %c128] : memref<128x256xf32, #tpu.memory_space<vmem>>, vector<128x128xf32>
    tpu.vector_store %arg3[%c0_23, %c128], %59 {strides = array<i32>} : memref<128x256xf32, #tpu.memory_space<vmem>>, vector<128x128xf32>,
    return
  }
  func.func @transform_0(%arg0: i32) -> (i32, i32) {
    %c0_i32 = arith.constant 0 : i32
    %c0_i32_0 = arith.constant 0 : i32
    return %arg0, %c0_i32 : i32, i32
  }
  func.func @transform_1(%arg0: i32) -> (i32, i32) {
    %c0_i32 = arith.constant 0 : i32
    %c0_i32_0 = arith.constant 0 : i32
    %c0_i32_1 = arith.constant 0 : i32
    return %c0_i32, %c0_i32_0 : i32, i32
  }
  func.func @transform_2(%arg0: i32) -> (i32, i32) {
    %c0_i32 = arith.constant 0 : i32
    %c0_i32_0 = arith.constant 0 : i32
    return %arg0, %c0_i32 : i32, i32
  }
}

</mosaic_0001>

<llo_original>
// kernel: tpu_custom_call.1
$region0: #{tpu_custom_call.1}
  #allocation0 [shape = 'u32[]', space=smem, size = 0x4, offset = 0x4, fixed_abs, tag = 'smem constant byte address 0x4 - core index']
  #allocation1 [shape = 'u32[144,128]{1,0:T(1,128)}', space=vmem, size = 0x12000, scoped, tag = 'internal scratch']
  %s0 = inlined_call_operand.vmem [shape: f32[256,2], index: 0, kind: input, shape index: {}]
  %s1 = inlined_call_operand.vmem [shape: f32[2,128], index: 1, kind: input, shape index: {}]
  %s2 = inlined_call_operand.hbm [shape: f32[256,256], index: 2, kind: output, shape index: {}]
  %s3 = sld [smem:[#allocation0]]
  $region41: #{tpu_custom_call.1} parent=0
    _
  %s5 = ssub.s32 1, %s3
  %s6 = scalar_select 0, %s5, %s3
  $region1: #{tpu_custom_call.1} parent=0
    #allocation2 [shape = 'u8[262144]{0}', space=vmem, size = 0x40000, scoped, tag = 'output window, operand 0']
    #allocation3 [shape = 's32[2]{0}', space=sflag, size = 0x8, scoped, tag = 'scoped memory for tpu_custom_call.1']
    %7 = vsyncpa [#allocation3], 0
    %s8 = scalar_lea.sflag [#allocation3], 1
    %9 = vsyncpa %s8, 0
    loop: start=0, step=1, limit=4
    $region2: #{tpu_custom_call.1} parent=1 // loop_pre_header
      _
    $region3: #{tpu_custom_call.1} parent=1 // loop_header
      %s11 = sphi 0, %s15
      %p12 = scmp.ge.s32.totalorder %s11, 4
      %s21 = sphi 0, %s23
      %s24 = sphi 0, %s21
      %s25 = sphi 0, %s24
      %s41 = sphi 0, %s25
      %s45 = sphi 0, %s45
      %s47 = sphi 0, %s45
      %s48 = sphi 0, %s47
      %s62 = sphi 0, %s48
      %s68 = sphi 0, %s70
      %s71 = sphi 0, %s68
      %s72 = sphi 0, %s71
      %s88 = sphi 0, %s72
    $region4: #{tpu_custom_call.1} parent=1 // loop_header_branch
      %14 = sbr.rel (%p12) target = $region8
    $region5: #{tpu_custom_call.1} parent=1 // loop_body
      %s16 = ssub.s32 %s11, 1
      %s17 = ssub.s32 %s11, 2
      %s18 = sadd.s32 %s11, 1
      %s19 = ssub.s32 %s11, %s18
      %p20 = scmp.eq.s32.totalorder %s19, 0
      %s22 = sadd.s32 %s21, 1
      %s23 = scalar_select %p20, %s21, %s22
      %p26 = pneg %p20
      %p27 = scmp.eq.s32.totalorder %s11, 1
      %p28 = por %p26, %p27
      %p29 = scmp.ne.s32.totalorder %s21, %s24
      %p30 = scmp.eq.s32.totalorder %s11, 0
      %p31 = por %p29, %p30
      %p32 = scmp.ne.s32.totalorder %s21, %s24
      %p33 = scmp.eq.s32.totalorder %s16, 1
      %p34 = por %p32, %p33
      %p35 = scmp.ne.s32.totalorder %s24, %s25
      %p36 = scmp.eq.s32.totalorder %s16, 0
      %p37 = por %p35, %p36
      %p38 = scmp.ne.s32.totalorder %s24, %s25
      %p39 = scmp.eq.s32.totalorder %s17, 1
      %p40 = por %p38, %p39
      %p42 = scmp.ne.s32.totalorder %s25, %s41
      %p43 = scmp.eq.s32.totalorder %s17, 0
      %p44 = por %p42, %p43
      %s46 = sadd.s32 %s45, 1
      %p49 = scmp.eq.s32.totalorder %s11, 1
      %p50 = scmp.ne.s32.totalorder %s45, %s47
      %p51 = scmp.eq.s32.totalorder %s11, 0
      %p52 = por %p50, %p51
      %p53 = scmp.ne.s32.totalorder %s45, %s47
      %p54 = scmp.eq.s32.totalorder %s16, 1
      %p55 = por %p53, %p54
      %p56 = scmp.ne.s32.totalorder %s47, %s48
      %p57 = scmp.eq.s32.totalorder %s16, 0
      %p58 = por %p56, %p57
      %p59 = scmp.ne.s32.totalorder %s47, %s48
      %p60 = scmp.eq.s32.totalorder %s17, 1
      %p61 = por %p59, %p60
      %p63 = scmp.ne.s32.totalorder %s48, %s62
      %p64 = scmp.eq.s32.totalorder %s17, 0
      %p65 = por %p63, %p64
      %s66 = ssub.s32 %s11, %s18
      %p67 = scmp.eq.s32.totalorder %s66, 0
      %s69 = sadd.s32 %s68, 1
      %s70 = scalar_select %p67, %s68, %s69
      %p73 = pneg %p67
      %p74 = scmp.eq.s32.totalorder %s11, 1
      %p75 = por %p73, %p74
      %p76 = scmp.ne.s32.totalorder %s68, %s71
      %p77 = scmp.eq.s32.totalorder %s11, 0
      %p78 = por %p76, %p77
      %p79 = scmp.ne.s32.totalorder %s68, %s71
      %p80 = scmp.eq.s32.totalorder %s16, 1
      %p81 = por %p79, %p80
      %p82 = scmp.ne.s32.totalorder %s71, %s72
      %p83 = scmp.eq.s32.totalorder %s16, 0
      %p84 = por %p82, %p83
      %p85 = scmp.ne.s32.totalorder %s71, %s72
      %p86 = scmp.eq.s32.totalorder %s17, 1
      %p87 = por %p85, %p86
      %p89 = scmp.ne.s32.totalorder %s72, %s88
      %p90 = scmp.eq.s32.totalorder %s17, 0
      %p91 = por %p89, %p90
      %p92 = scmp.le.s32.totalorder 1, %s11
      %p93 = scmp.lt.s32.totalorder %s11, 3
      %p94 = pnand %p92, %p93
      %p95 = pneg %p94
      // Predicated region
      $region9: #{tpu_custom_call.1} parent=5 // pred_check
        _
      $region10: #{tpu_custom_call.1} parent=5 // pred_check_branch
        %97 = sbr.rel (%p94) target = $region12
      $region11: #{tpu_custom_call.1} parent=5 // pred_region
        %s98 = ssub.s32 %s11, 1
        // Predicated region
        $region13: #{tpu_custom_call.1} parent=11 // pred_check
          %p99 = pneg %p58
        $region14: #{tpu_custom_call.1} parent=11 // pred_check_branch
          %101 = sbr.rel (%p99) target = $region16
        $region15: #{tpu_custom_call.1} parent=11 // pred_region
          _
        $region16: #{tpu_custom_call.1} parent=11 // pred_fallthru
          _
      $region12: #{tpu_custom_call.1} parent=5 // pred_fallthru
        _
      %p102 = scmp.lt.s32.totalorder %s11, 2
      // Predicated region
      $region17: #{tpu_custom_call.1} parent=5 // pred_check
        %p103 = pneg %p102
      $region18: #{tpu_custom_call.1} parent=5 // pred_check_branch
        %105 = sbr.rel (%p103) target = $region20
      $region19: #{tpu_custom_call.1} parent=5 // pred_region
        // Predicated region
        $region21: #{tpu_custom_call.1} parent=19 // pred_check
          %p106 = pneg %p31
        $region22: #{tpu_custom_call.1} parent=19 // pred_check_branch
          %108 = sbr.rel (%p106) target = $region24
        $region23: #{tpu_custom_call.1} parent=19 // pred_region
          %s109 = smul.u32 16, %s11
          %p110 = scmp.lt.s32.totalorder %s109, 31
          %s111 = scalar_select %p110, %s109, 31
          %s112 = smul.addr %s111, 8
          %s113 = scalar_lea.vmem %s0, %s112
          %s114 = smul.u32 16, %s11
        $region24: #{tpu_custom_call.1} parent=19 // pred_fallthru
          _
      $region20: #{tpu_custom_call.1} parent=5 // pred_fallthru
        _
      %p115 = scmp.le.s32.totalorder 1, %s11
      %p116 = scmp.lt.s32.totalorder %s11, 3
      %p117 = pnand %p115, %p116
      %p118 = pneg %p117
      // Predicated region
      $region25: #{tpu_custom_call.1} parent=5 // pred_check
        _
      $region26: #{tpu_custom_call.1} parent=5 // pred_check_branch
        %120 = sbr.rel (%p117) target = $region28
      $region27: #{tpu_custom_call.1} parent=5 // pred_region
        %s121 = ssub.s32 %s11, 1
        %s122 = smul.u32 16, %s16
        %p123 = scmp.lt.s32.totalorder %s122, 31
        %s124 = scalar_select %p123, %s122, 31
        %s125 = smul.addr %s124, 8
        %s126 = scalar_lea.vmem %s0, %s125
        %p127 = pneg %p37
        %p128 = pneg %p34
        %p129 = pneg %p58
        %p130 = pneg %p55
        %p131 = pneg %p84
        %p132 = pneg %p81
        %s133 = sand.u32 %s71, 1
        %s134 = scalar_lea.sflag [#allocation3], %s133
        %s135 = sand.u32 %s71, 1
        %s136 = smul.addr %s135, 256
        %s137 = scalar_lea.vmem [#allocation2], %s136
        %s138 = smul.u32 16, %s16
        %p139 = scmp.lt.s32.totalorder %s138, 31
        %s140 = scalar_select %p139, %s138, 31
        %s141 = smul.addr %s140, 8
        %s142 = scalar_lea.vmem %s0, %s141
        %s143 = smul.u32 16, %s16
        %s144 = smul.u32 16, %s16
        %v145 = vld [vmem:[%s142] sm:$0xff]
        %v146 = vld [vmem:[%s142 + $0x8] sm:$0xff]
        %v147 = vld [vmem:[%s142 + $0x10] sm:$0xff]
        %v148 = vld [vmem:[%s142 + $0x18] sm:$0xff]
        %v149 = vld [vmem:[%s142 + $0x20] sm:$0xff]
        %v150 = vld [vmem:[%s142 + $0x28] sm:$0xff]
        %v151 = vld [vmem:[%s142 + $0x30] sm:$0xff]
        %v152 = vld [vmem:[%s142 + $0x38] sm:$0xff]
        %v153 = vld [vmem:[%s142 + $0x40] sm:$0xff]
        %v154 = vld [vmem:[%s142 + $0x48] sm:$0xff]
        %v155 = vld [vmem:[%s142 + $0x50] sm:$0xff]
        %v156 = vld [vmem:[%s142 + $0x58] sm:$0xff]
        %v157 = vld [vmem:[%s142 + $0x60] sm:$0xff]
        %v158 = vld [vmem:[%s142 + $0x68] sm:$0xff]
        %v159 = vld [vmem:[%s142 + $0x70] sm:$0xff]
        %v160 = vld [vmem:[%s142 + $0x78] sm:$0xff]
        %v161 = vld [vmem:[%s1] sm:$0x3]
        %vm162 = vcmask 15360
        %v164 = vsel %vm162, %v145, 0
        %v167 = vsel %vm162, %v146, 0
        %v170 = vsel %vm162, %v147, 0
        %v173 = vsel %vm162, %v148, 0
        %v176 = vsel %vm162, %v149, 0
        %v179 = vsel %vm162, %v150, 0
        %v182 = vsel %vm162, %v151, 0
        %v185 = vsel %vm162, %v152, 0
        %v188 = vsel %vm162, %v153, 0
        %v191 = vsel %vm162, %v154, 0
        %v194 = vsel %vm162, %v155, 0
        %v197 = vsel %vm162, %v156, 0
        %v200 = vsel %vm162, %v157, 0
        %v203 = vsel %vm162, %v158, 0
        %v206 = vsel %vm162, %v159, 0
        %v209 = vsel %vm162, %v160, 0
        %vm211 = vcmask 1041408
        %v213 = vsel %vm211, %v161, 0
        %215 = vmatprep.subr.mxu0 0.0
        %216 = vmatpush1.msra.mxu0 0.0
        %217 = vmatprep.subr.mxu0 0.0
        %218 = vmatpush1.msra.mxu0 0.0
        %219 = vmatprep.subr.mxu0 0.0
        %220 = vmatpush1.msra.mxu0 0.0
        %221 = vmatprep.subr.mxu0 0.0
        %222 = vmatpush1.msra.mxu0 0.0
        %223 = vmatprep.subr.mxu0 0.0
        %224 = vmatpush1.msra.mxu0 0.0
        %225 = vmatprep.subr.mxu0 0.0
        %226 = vmatpush1.msra.mxu0 0.0
        %227 = vmatprep.subr.mxu0 0.0
        %228 = vmatpush1.msra.mxu0 0.0
        %229 = vmatprep.subr.mxu0 0.0
        %230 = vmatpush1.msra.mxu0 0.0
        %231 = vmatprep.subr.mxu0 0.0
        %232 = vmatpush1.msra.mxu0 0.0
        %233 = vmatprep.subr.mxu0 0.0
        %234 = vmatpush1.msra.mxu0 0.0
        %235 = vmatprep.subr.mxu0 0.0
        %236 = vmatpush1.msra.mxu0 0.0
        %237 = vmatprep.subr.mxu0 0.0
        %238 = vmatpush1.msra.mxu0 0.0
        %239 = vmatprep.subr.mxu0 0.0
        %240 = vmatpush1.msra.mxu0 0.0
        %241 = vmatprep.subr.mxu0 0.0
        %242 = vmatpush1.msra.mxu0 0.0
        %243 = vmatprep.subr.mxu0 0.0
        %244 = vmatpush1.msra.mxu0 0.0
        %245 = vmatprep.subr.mxu0 0.0
        %246 = vmatpush1.msra.mxu0 %v213
        %247 = vmatprep.subr.mxu0 0.0
        %248 = vmatpush2.msra.mxu0 0.0
        %249 = vmatprep.subr.mxu0 0.0
        %250 = vmatpush2.msra.mxu0 0.0
        %251 = vmatprep.subr.mxu0 0.0
        %252 = vmatpush2.msra.mxu0 0.0
        %253 = vmatprep.subr.mxu0 0.0
        %254 = vmatpush2.msra.mxu0 0.0
        %255 = vmatprep.subr.mxu0 0.0
        %256 = vmatpush2.msra.mxu0 0.0
        %257 = vmatprep.subr.mxu0 0.0
        %258 = vmatpush2.msra.mxu0 0.0
        %259 = vmatprep.subr.mxu0 0.0
        %260 = vmatpush2.msra.mxu0 0.0
        %261 = vmatprep.subr.mxu0 0.0
        %262 = vmatpush2.msra.mxu0 0.0
        %263 = vmatprep.subr.mxu0 0.0
        %264 = vmatpush2.msra.mxu0 0.0
        %265 = vmatprep.subr.mxu0 0.0
        %266 = vmatpush2.msra.mxu0 0.0
        %267 = vmatprep.subr.mxu0 0.0
        %268 = vmatpush2.msra.mxu0 0.0
        %269 = vmatprep.subr.mxu0 0.0
        %270 = vmatpush2.msra.mxu0 0.0
        %271 = vmatprep.subr.mxu0 0.0
        %272 = vmatpush2.msra.mxu0 0.0
        %273 = vmatprep.subr.mxu0 0.0
        %274 = vmatpush2.msra.mxu0 0.0
        %275 = vmatprep.subr.mxu0 0.0
        %276 = vmatpush2.msra.mxu0 0.0
        %277 = vmatprep.subr.mxu0 0.0
        %278 = vmatpush2.msra.mxu0 0.0
        %279 = vmatprep.mubr.f32.mxu0 0.0
        %280 = vmatmul.mubr.f32.gmra.mxu0 %v164
        %v281 = vpop.f32.mrf.mxu0
        %v282 = vadd.f32 0.0, %v281
        %v283 = vpop.f32.mrf.mxu0
        %284 = vmatprep.mubr.f32.mxu0 0.0
        %285 = vmatmul.mubr.f32.gmra.mxu0 %v167
        %v286 = vpop.f32.mrf.mxu0
        %v287 = vadd.f32 0.0, %v286
        %v288 = vpop.f32.mrf.mxu0
        %289 = vmatprep.mubr.f32.mxu0 0.0
        %290 = vmatmul.mubr.f32.gmra.mxu0 %v170
        %v291 = vpop.f32.mrf.mxu0
        %v292 = vadd.f32 0.0, %v291
        %v293 = vpop.f32.mrf.mxu0
        %294 = vmatprep.mubr.f32.mxu0 0.0
        %295 = vmatmul.mubr.f32.gmra.mxu0 %v173
        %v296 = vpop.f32.mrf.mxu0
        %v297 = vadd.f32 0.0, %v296
        %v298 = vpop.f32.mrf.mxu0
        %299 = vmatprep.mubr.f32.mxu0 0.0
        %300 = vmatmul.mubr.f32.gmra.mxu0 %v176
        %v301 = vpop.f32.mrf.mxu0
        %v302 = vadd.f32 0.0, %v301
        %v303 = vpop.f32.mrf.mxu0
        %304 = vmatprep.mubr.f32.mxu0 0.0
        %305 = vmatmul.mubr.f32.gmra.mxu0 %v179
        %v306 = vpop.f32.mrf.mxu0
        %v307 = vadd.f32 0.0, %v306
        %v308 = vpop.f32.mrf.mxu0
        %309 = vmatprep.mubr.f32.mxu0 0.0
        %310 = vmatmul.mubr.f32.gmra.mxu0 %v182
        %v311 = vpop.f32.mrf.mxu0
        %v312 = vadd.f32 0.0, %v311
        %v313 = vpop.f32.mrf.mxu0
        %314 = vmatprep.mubr.f32.mxu0 0.0
        %315 = vmatmul.mubr.f32.gmra.mxu0 %v185
        %v316 = vpop.f32.mrf.mxu0
        %v317 = vadd.f32 0.0, %v316
        %v318 = vpop.f32.mrf.mxu0
        %319 = vmatprep.mubr.f32.mxu0 0.0
        %320 = vmatmul.mubr.f32.gmra.mxu0 %v188
        %v321 = vpop.f32.mrf.mxu0
        %v322 = vadd.f32 0.0, %v321
        %v323 = vpop.f32.mrf.mxu0
        %324 = vmatprep.mubr.f32.mxu0 0.0
        %325 = vmatmul.mubr.f32.gmra.mxu0 %v191
        %v326 = vpop.f32.mrf.mxu0
        %v327 = vadd.f32 0.0, %v326
        %v328 = vpop.f32.mrf.mxu0
        %329 = vmatprep.mubr.f32.mxu0 0.0
        %330 = vmatmul.mubr.f32.gmra.mxu0 %v194
        %v331 = vpop.f32.mrf.mxu0
        %v332 = vadd.f32 0.0, %v331
        %v333 = vpop.f32.mrf.mxu0
        %334 = vmatprep.mubr.f32.mxu0 0.0
        %335 = vmatmul.mubr.f32.gmra.mxu0 %v197
        %v336 = vpop.f32.mrf.mxu0
        %v337 = vadd.f32 0.0, %v336
        %v338 = vpop.f32.mrf.mxu0
        %339 = vmatprep.mubr.f32.mxu0 0.0
        %340 = vmatmul.mubr.f32.gmra.mxu0 %v200
        %v341 = vpop.f32.mrf.mxu0
        %v342 = vadd.f32 0.0, %v341
        %v343 = vpop.f32.mrf.mxu0
        %344 = vmatprep.mubr.f32.mxu0 0.0
        %345 = vmatmul.mubr.f32.gmra.mxu0 %v203
        %v346 = vpop.f32.mrf.mxu0
        %v347 = vadd.f32 0.0, %v346
        %v348 = vpop.f32.mrf.mxu0
        %349 = vmatprep.mubr.f32.mxu0 0.0
        %350 = vmatmul.mubr.f32.gmra.mxu0 %v206
        %v351 = vpop.f32.mrf.mxu0
        %v352 = vadd.f32 0.0, %v351
        %v353 = vpop.f32.mrf.mxu0
        %354 = vmatprep.mubr.f32.mxu0 0.0
        %355 = vmatmul.mubr.f32.gmra.mxu0 %v209
        %v356 = vpop.f32.mrf.mxu0
        %v357 = vadd.f32 0.0, %v356
        %v358 = vpop.f32.mrf.mxu0
        %359 = vdwg.mxu0
        %v360 = vmul.f32 %v282, 0.63661975
        %v361 = vmul.f32 %v287, 0.63661975
        %v362 = vmul.f32 %v292, 0.63661975
        %v363 = vmul.f32 %v297, 0.63661975
        %v364 = vmul.f32 %v302, 0.63661975
        %v365 = vmul.f32 %v307, 0.63661975
        %v366 = vmul.f32 %v312, 0.63661975
        %v367 = vmul.f32 %v317, 0.63661975
        %v368 = vmul.f32 %v322, 0.63661975
        %v369 = vmul.f32 %v327, 0.63661975
        %v370 = vmul.f32 %v332, 0.63661975
        %v371 = vmul.f32 %v337, 0.63661975
        %v372 = vmul.f32 %v342, 0.63661975
        %v373 = vmul.f32 %v347, 0.63661975
        %v374 = vmul.f32 %v352, 0.63661975
        %v375 = vmul.f32 %v357, 0.63661975
        %v376 = vadd.f32 %v360, 0.5
        %v377 = vadd.f32 %v361, 0.5
        %v378 = vadd.f32 %v362, 0.5
        %v379 = vadd.f32 %v363, 0.5
        %v380 = vadd.f32 %v364, 0.5
        %v381 = vadd.f32 %v365, 0.5
        %v382 = vadd.f32 %v366, 0.5
        %v383 = vadd.f32 %v367, 0.5
        %v384 = vadd.f32 %v368, 0.5
        %v385 = vadd.f32 %v369, 0.5
        %v386 = vadd.f32 %v370, 0.5
        %v387 = vadd.f32 %v371, 0.5
        %v388 = vadd.f32 %v372, 0.5
        %v389 = vadd.f32 %v373, 0.5
        %v390 = vadd.f32 %v374, 0.5
        %v391 = vadd.f32 %v375, 0.5
        %v392 = vfloor.f32 %v376
        %v393 = vfloor.f32 %v377
        %v394 = vfloor.f32 %v378
        %v395 = vfloor.f32 %v379
        %v396 = vfloor.f32 %v380
        %v397 = vfloor.f32 %v381
        %v398 = vfloor.f32 %v382
        %v399 = vfloor.f32 %v383
        %v400 = vfloor.f32 %v384
        %v401 = vfloor.f32 %v385
        %v402 = vfloor.f32 %v386
        %v403 = vfloor.f32 %v387
        %v404 = vfloor.f32 %v388
        %v405 = vfloor.f32 %v389
        %v406 = vfloor.f32 %v390
        %v407 = vfloor.f32 %v391
        %v408 = vmul.f32 %v392, 1.5707855
        %v409 = vmul.f32 %v393, 1.5707855
        %v410 = vmul.f32 %v394, 1.5707855
        %v411 = vmul.f32 %v395, 1.5707855
        %v412 = vmul.f32 %v396, 1.5707855
        %v413 = vmul.f32 %v397, 1.5707855
        %v414 = vmul.f32 %v398, 1.5707855
        %v415 = vmul.f32 %v399, 1.5707855
        %v416 = vmul.f32 %v400, 1.5707855
        %v417 = vmul.f32 %v401, 1.5707855
        %v418 = vmul.f32 %v402, 1.5707855
        %v419 = vmul.f32 %v403, 1.5707855
        %v420 = vmul.f32 %v404, 1.5707855
        %v421 = vmul.f32 %v405, 1.5707855
        %v422 = vmul.f32 %v406, 1.5707855
        %v423 = vmul.f32 %v407, 1.5707855
        %v424 = vsub.f32 %v282, %v408
        %v425 = vsub.f32 %v287, %v409
        %v426 = vsub.f32 %v292, %v410
        %v427 = vsub.f32 %v297, %v411
        %v428 = vsub.f32 %v302, %v412
        %v429 = vsub.f32 %v307, %v413
        %v430 = vsub.f32 %v312, %v414
        %v431 = vsub.f32 %v317, %v415
        %v432 = vsub.f32 %v322, %v416
        %v433 = vsub.f32 %v327, %v417
        %v434 = vsub.f32 %v332, %v418
        %v435 = vsub.f32 %v337, %v419
        %v436 = vsub.f32 %v342, %v420
        %v437 = vsub.f32 %v347, %v421
        %v438 = vsub.f32 %v352, %v422
        %v439 = vsub.f32 %v357, %v423
        %v440 = vmul.f32 %v392, 1.0804334e-05
        %v441 = vmul.f32 %v393, 1.0804334e-05
        %v442 = vmul.f32 %v394, 1.0804334e-05
        %v443 = vmul.f32 %v395, 1.0804334e-05
        %v444 = vmul.f32 %v396, 1.0804334e-05
        %v445 = vmul.f32 %v397, 1.0804334e-05
        %v446 = vmul.f32 %v398, 1.0804334e-05
        %v447 = vmul.f32 %v399, 1.0804334e-05
        %v448 = vmul.f32 %v400, 1.0804334e-05
        %v449 = vmul.f32 %v401, 1.0804334e-05
        %v450 = vmul.f32 %v402, 1.0804334e-05
        %v451 = vmul.f32 %v403, 1.0804334e-05
        %v452 = vmul.f32 %v404, 1.0804334e-05
        %v453 = vmul.f32 %v405, 1.0804334e-05
        %v454 = vmul.f32 %v406, 1.0804334e-05
        %v455 = vmul.f32 %v407, 1.0804334e-05
        %v456 = vsub.f32 %v424, %v440
        %v457 = vsub.f32 %v425, %v441
        %v458 = vsub.f32 %v426, %v442
        %v459 = vsub.f32 %v427, %v443
        %v460 = vsub.f32 %v428, %v444
        %v461 = vsub.f32 %v429, %v445
        %v462 = vsub.f32 %v430, %v446
        %v463 = vsub.f32 %v431, %v447
        %v464 = vsub.f32 %v432, %v448
        %v465 = vsub.f32 %v433, %v449
        %v466 = vsub.f32 %v434, %v450
        %v467 = vsub.f32 %v435, %v451
        %v468 = vsub.f32 %v436, %v452
        %v469 = vsub.f32 %v437, %v453
        %v470 = vsub.f32 %v438, %v454
        %v471 = vsub.f32 %v439, %v455
        %v472 = vmul.f32 %v392, -1.6520119e-13
        %v473 = vmul.f32 %v393, -1.6520119e-13
        %v474 = vmul.f32 %v394, -1.6520119e-13
        %v475 = vmul.f32 %v395, -1.6520119e-13
        %v476 = vmul.f32 %v396, -1.6520119e-13
        %v477 = vmul.f32 %v397, -1.6520119e-13
        %v478 = vmul.f32 %v398, -1.6520119e-13
        %v479 = vmul.f32 %v399, -1.6520119e-13
        %v480 = vmul.f32 %v400, -1.6520119e-13
        %v481 = vmul.f32 %v401, -1.6520119e-13
        %v482 = vmul.f32 %v402, -1.6520119e-13
        %v483 = vmul.f32 %v403, -1.6520119e-13
        %v484 = vmul.f32 %v404, -1.6520119e-13
        %v485 = vmul.f32 %v405, -1.6520119e-13
        %v486 = vmul.f32 %v406, -1.6520119e-13
        %v487 = vmul.f32 %v407, -1.6520119e-13
        %v488 = vsub.f32 %v456, %v472
        %v489 = vsub.f32 %v457, %v473
        %v490 = vsub.f32 %v458, %v474
        %v491 = vsub.f32 %v459, %v475
        %v492 = vsub.f32 %v460, %v476
        %v493 = vsub.f32 %v461, %v477
        %v494 = vsub.f32 %v462, %v478
        %v495 = vsub.f32 %v463, %v479
        %v496 = vsub.f32 %v464, %v480
        %v497 = vsub.f32 %v465, %v481
        %v498 = vsub.f32 %v466, %v482
        %v499 = vsub.f32 %v467, %v483
        %v500 = vsub.f32 %v468, %v484
        %v501 = vsub.f32 %v469, %v485
        %v502 = vsub.f32 %v470, %v486
        %v503 = vsub.f32 %v471, %v487
        %v504 = vmul.f32 %v488, %v488
        %v505 = vmul.f32 %v489, %v489
        %v506 = vmul.f32 %v490, %v490
        %v507 = vmul.f32 %v491, %v491
        %v508 = vmul.f32 %v492, %v492
        %v509 = vmul.f32 %v493, %v493
        %v510 = vmul.f32 %v494, %v494
        %v511 = vmul.f32 %v495, %v495
        %v512 = vmul.f32 %v496, %v496
        %v513 = vmul.f32 %v497, %v497
        %v514 = vmul.f32 %v498, %v498
        %v515 = vmul.f32 %v499, %v499
        %v516 = vmul.f32 %v500, %v500
        %v517 = vmul.f32 %v501, %v501
        %v518 = vmul.f32 %v502, %v502
        %v519 = vmul.f32 %v503, %v503
        %v520 = vmul.f32 %v504, -1.219706e-05
        %v521 = vmul.f32 %v505, -1.219706e-05
        %v522 = vmul.f32 %v506, -1.219706e-05
        %v523 = vmul.f32 %v507, -1.219706e-05
        %v524 = vmul.f32 %v508, -1.219706e-05
        %v525 = vmul.f32 %v509, -1.219706e-05
        %v526 = vmul.f32 %v510, -1.219706e-05
        %v527 = vmul.f32 %v511, -1.219706e-05
        %v528 = vmul.f32 %v512, -1.219706e-05
        %v529 = vmul.f32 %v513, -1.219706e-05
        %v530 = vmul.f32 %v514, -1.219706e-05
        %v531 = vmul.f32 %v515, -1.219706e-05
        %v532 = vmul.f32 %v516, -1.219706e-05
        %v533 = vmul.f32 %v517, -1.219706e-05
        %v534 = vmul.f32 %v518, -1.219706e-05
        %v535 = vmul.f32 %v519, -1.219706e-05
        %v536 = vadd.f32 %v520, 0.0005207601
        %v537 = vadd.f32 %v521, 0.0005207601
        %v538 = vadd.f32 %v522, 0.0005207601
        %v539 = vadd.f32 %v523, 0.0005207601
        %v540 = vadd.f32 %v524, 0.0005207601
        %v541 = vadd.f32 %v525, 0.0005207601
        %v542 = vadd.f32 %v526, 0.0005207601
        %v543 = vadd.f32 %v527, 0.0005207601
        %v544 = vadd.f32 %v528, 0.0005207601
        %v545 = vadd.f32 %v529, 0.0005207601
        %v546 = vadd.f32 %v530, 0.0005207601
        %v547 = vadd.f32 %v531, 0.0005207601
        %v548 = vadd.f32 %v532, 0.0005207601
        %v549 = vadd.f32 %v533, 0.0005207601
        %v550 = vadd.f32 %v534, 0.0005207601
        %v551 = vadd.f32 %v535, 0.0005207601
        %v552 = vmul.f32 %v504, %v536
        %v553 = vmul.f32 %v505, %v537
        %v554 = vmul.f32 %v506, %v538
        %v555 = vmul.f32 %v507, %v539
        %v556 = vmul.f32 %v508, %v540
        %v557 = vmul.f32 %v509, %v541
        %v558 = vmul.f32 %v510, %v542
        %v559 = vmul.f32 %v511, %v543
        %v560 = vmul.f32 %v512, %v544
        %v561 = vmul.f32 %v513, %v545
        %v562 = vmul.f32 %v514, %v546
        %v563 = vmul.f32 %v515, %v547
        %v564 = vmul.f32 %v516, %v548
        %v565 = vmul.f32 %v517, %v549
        %v566 = vmul.f32 %v518, %v550
        %v567 = vmul.f32 %v519, %v551
        %v568 = vadd.f32 %v552, -0.0104166595
        %v569 = vadd.f32 %v553, -0.0104166595
        %v570 = vadd.f32 %v554, -0.0104166595
        %v571 = vadd.f32 %v555, -0.0104166595
        %v572 = vadd.f32 %v556, -0.0104166595
        %v573 = vadd.f32 %v557, -0.0104166595
        %v574 = vadd.f32 %v558, -0.0104166595
        %v575 = vadd.f32 %v559, -0.0104166595
        %v576 = vadd.f32 %v560, -0.0104166595
        %v577 = vadd.f32 %v561, -0.0104166595
        %v578 = vadd.f32 %v562, -0.0104166595
        %v579 = vadd.f32 %v563, -0.0104166595
        %v580 = vadd.f32 %v564, -0.0104166595
        %v581 = vadd.f32 %v565, -0.0104166595
        %v582 = vadd.f32 %v566, -0.0104166595
        %v583 = vadd.f32 %v567, -0.0104166595
        %v584 = vmul.f32 %v504, %v568
        %v585 = vmul.f32 %v505, %v569
        %v586 = vmul.f32 %v506, %v570
        %v587 = vmul.f32 %v507, %v571
        %v588 = vmul.f32 %v508, %v572
        %v589 = vmul.f32 %v509, %v573
        %v590 = vmul.f32 %v510, %v574
        %v591 = vmul.f32 %v511, %v575
        %v592 = vmul.f32 %v512, %v576
        %v593 = vmul.f32 %v513, %v577
        %v594 = vmul.f32 %v514, %v578
        %v595 = vmul.f32 %v515, %v579
        %v596 = vmul.f32 %v516, %v580
        %v597 = vmul.f32 %v517, %v581
        %v598 = vmul.f32 %v518, %v582
        %v599 = vmul.f32 %v519, %v583
        %v600 = vadd.f32 %v584, 0.0625
        %v601 = vadd.f32 %v585, 0.0625
        %v602 = vadd.f32 %v586, 0.0625
        %v603 = vadd.f32 %v587, 0.0625
        %v604 = vadd.f32 %v588, 0.0625
        %v605 = vadd.f32 %v589, 0.0625
        %v606 = vadd.f32 %v590, 0.0625
        %v607 = vadd.f32 %v591, 0.0625
        %v608 = vadd.f32 %v592, 0.0625
        %v609 = vadd.f32 %v593, 0.0625
        %v610 = vadd.f32 %v594, 0.0625
        %v611 = vadd.f32 %v595, 0.0625
        %v612 = vadd.f32 %v596, 0.0625
        %v613 = vadd.f32 %v597, 0.0625
        %v614 = vadd.f32 %v598, 0.0625
        %v615 = vadd.f32 %v599, 0.0625
        %v616 = vmul.f32 %v488, %v600
        %v617 = vmul.f32 %v489, %v601
        %v618 = vmul.f32 %v490, %v602
        %v619 = vmul.f32 %v491, %v603
        %v620 = vmul.f32 %v492, %v604
        %v621 = vmul.f32 %v493, %v605
        %v622 = vmul.f32 %v494, %v606
        %v623 = vmul.f32 %v495, %v607
        %v624 = vmul.f32 %v496, %v608
        %v625 = vmul.f32 %v497, %v609
        %v626 = vmul.f32 %v498, %v610
        %v627 = vmul.f32 %v499, %v611
        %v628 = vmul.f32 %v500, %v612
        %v629 = vmul.f32 %v501, %v613
        %v630 = vmul.f32 %v502, %v614
        %v631 = vmul.f32 %v503, %v615
        %v632 = vmul.f32 %v504, 1.5270723e-06
        %v633 = vmul.f32 %v505, 1.5270723e-06
        %v634 = vmul.f32 %v506, 1.5270723e-06
        %v635 = vmul.f32 %v507, 1.5270723e-06
        %v636 = vmul.f32 %v508, 1.5270723e-06
        %v637 = vmul.f32 %v509, 1.5270723e-06
        %v638 = vmul.f32 %v510, 1.5270723e-06
        %v639 = vmul.f32 %v511, 1.5270723e-06
        %v640 = vmul.f32 %v512, 1.5270723e-06
        %v641 = vmul.f32 %v513, 1.5270723e-06
        %v642 = vmul.f32 %v514, 1.5270723e-06
        %v643 = vmul.f32 %v515, 1.5270723e-06
        %v644 = vmul.f32 %v516, 1.5270723e-06
        %v645 = vmul.f32 %v517, 1.5270723e-06
        %v646 = vmul.f32 %v518, 1.5270723e-06
        %v647 = vmul.f32 %v519, 1.5270723e-06
        %v648 = vadd.f32 %v632, -8.679573e-05
        %v649 = vadd.f32 %v633, -8.679573e-05
        %v650 = vadd.f32 %v634, -8.679573e-05
        %v651 = vadd.f32 %v635, -8.679573e-05
        %v652 = vadd.f32 %v636, -8.679573e-05
        %v653 = vadd.f32 %v637, -8.679573e-05
        %v654 = vadd.f32 %v638, -8.679573e-05
        %v655 = vadd.f32 %v639, -8.679573e-05
        %v656 = vadd.f32 %v640, -8.679573e-05
        %v657 = vadd.f32 %v641, -8.679573e-05
        %v658 = vadd.f32 %v642, -8.679573e-05
        %v659 = vadd.f32 %v643, -8.679573e-05
        %v660 = vadd.f32 %v644, -8.679573e-05
        %v661 = vadd.f32 %v645, -8.679573e-05
        %v662 = vadd.f32 %v646, -8.679573e-05
        %v663 = vadd.f32 %v647, -8.679573e-05
        %v664 = vmul.f32 %v504, %v648
        %v665 = vmul.f32 %v505, %v649
        %v666 = vmul.f32 %v506, %v650
        %v667 = vmul.f32 %v507, %v651
        %v668 = vmul.f32 %v508, %v652
        %v669 = vmul.f32 %v509, %v653
        %v670 = vmul.f32 %v510, %v654
        %v671 = vmul.f32 %v511, %v655
        %v672 = vmul.f32 %v512, %v656
        %v673 = vmul.f32 %v513, %v657
        %v674 = vmul.f32 %v514, %v658
        %v675 = vmul.f32 %v515, %v659
        %v676 = vmul.f32 %v516, %v660
        %v677 = vmul.f32 %v517, %v661
        %v678 = vmul.f32 %v518, %v662
        %v679 = vmul.f32 %v519, %v663
        %v680 = vadd.f32 %v664, 0.0026041653
        %v681 = vadd.f32 %v665, 0.0026041653
        %v682 = vadd.f32 %v666, 0.0026041653
        %v683 = vadd.f32 %v667, 0.0026041653
        %v684 = vadd.f32 %v668, 0.0026041653
        %v685 = vadd.f32 %v669, 0.0026041653
        %v686 = vadd.f32 %v670, 0.0026041653
        %v687 = vadd.f32 %v671, 0.0026041653
        %v688 = vadd.f32 %v672, 0.0026041653
        %v689 = vadd.f32 %v673, 0.0026041653
        %v690 = vadd.f32 %v674, 0.0026041653
        %v691 = vadd.f32 %v675, 0.0026041653
        %v692 = vadd.f32 %v676, 0.0026041653
        %v693 = vadd.f32 %v677, 0.0026041653
        %v694 = vadd.f32 %v678, 0.0026041653
        %v695 = vadd.f32 %v679, 0.0026041653
        %v696 = vmul.f32 %v504, %v680
        %v697 = vmul.f32 %v505, %v681
        %v698 = vmul.f32 %v506, %v682
        %v699 = vmul.f32 %v507, %v683
        %v700 = vmul.f32 %v508, %v684
        %v701 = vmul.f32 %v509, %v685
        %v702 = vmul.f32 %v510, %v686
        %v703 = vmul.f32 %v511, %v687
        %v704 = vmul.f32 %v512, %v688
        %v705 = vmul.f32 %v513, %v689
        %v706 = vmul.f32 %v514, %v690
        %v707 = vmul.f32 %v515, %v691
        %v708 = vmul.f32 %v516, %v692
        %v709 = vmul.f32 %v517, %v693
        %v710 = vmul.f32 %v518, %v694
        %v711 = vmul.f32 %v519, %v695
        %v712 = vadd.f32 %v696, -0.03125
        %v713 = vadd.f32 %v697, -0.03125
        %v714 = vadd.f32 %v698, -0.03125
        %v715 = vadd.f32 %v699, -0.03125
        %v716 = vadd.f32 %v700, -0.03125
        %v717 = vadd.f32 %v701, -0.03125
        %v718 = vadd.f32 %v702, -0.03125
        %v719 = vadd.f32 %v703, -0.03125
        %v720 = vadd.f32 %v704, -0.03125
        %v721 = vadd.f32 %v705, -0.03125
        %v722 = vadd.f32 %v706, -0.03125
        %v723 = vadd.f32 %v707, -0.03125
        %v724 = vadd.f32 %v708, -0.03125
        %v725 = vadd.f32 %v709, -0.03125
        %v726 = vadd.f32 %v710, -0.03125
        %v727 = vadd.f32 %v711, -0.03125
        %v728 = vmul.f32 %v504, %v712
        %v729 = vmul.f32 %v505, %v713
        %v730 = vmul.f32 %v506, %v714
        %v731 = vmul.f32 %v507, %v715
        %v732 = vmul.f32 %v508, %v716
        %v733 = vmul.f32 %v509, %v717
        %v734 = vmul.f32 %v510, %v718
        %v735 = vmul.f32 %v511, %v719
        %v736 = vmul.f32 %v512, %v720
        %v737 = vmul.f32 %v513, %v721
        %v738 = vmul.f32 %v514, %v722
        %v739 = vmul.f32 %v515, %v723
        %v740 = vmul.f32 %v516, %v724
        %v741 = vmul.f32 %v517, %v725
        %v742 = vmul.f32 %v518, %v726
        %v743 = vmul.f32 %v519, %v727
        %v744 = vadd.f32 %v728, 0.0625
        %v745 = vadd.f32 %v729, 0.0625
        %v746 = vadd.f32 %v730, 0.0625
        %v747 = vadd.f32 %v731, 0.0625
        %v748 = vadd.f32 %v732, 0.0625
        %v749 = vadd.f32 %v733, 0.0625
        %v750 = vadd.f32 %v734, 0.0625
        %v751 = vadd.f32 %v735, 0.0625
        %v752 = vadd.f32 %v736, 0.0625
        %v753 = vadd.f32 %v737, 0.0625
        %v754 = vadd.f32 %v738, 0.0625
        %v755 = vadd.f32 %v739, 0.0625
        %v756 = vadd.f32 %v740, 0.0625
        %v757 = vadd.f32 %v741, 0.0625
        %v758 = vadd.f32 %v742, 0.0625
        %v759 = vadd.f32 %v743, 0.0625
        %v760 = vcvt.f32.s32.to.zero.pseudo %v392
        %v761 = vcvt.f32.s32.to.zero.pseudo %v393
        %v762 = vcvt.f32.s32.to.zero.pseudo %v394
        %v763 = vcvt.f32.s32.to.zero.pseudo %v395
        %v764 = vcvt.f32.s32.to.zero.pseudo %v396
        %v765 = vcvt.f32.s32.to.zero.pseudo %v397
        %v766 = vcvt.f32.s32.to.zero.pseudo %v398
        %v767 = vcvt.f32.s32.to.zero.pseudo %v399
        %v768 = vcvt.f32.s32.to.zero.pseudo %v400
        %v769 = vcvt.f32.s32.to.zero.pseudo %v401
        %v770 = vcvt.f32.s32.to.zero.pseudo %v402
        %v771 = vcvt.f32.s32.to.zero.pseudo %v403
        %v772 = vcvt.f32.s32.to.zero.pseudo %v404
        %v773 = vcvt.f32.s32.to.zero.pseudo %v405
        %v774 = vcvt.f32.s32.to.zero.pseudo %v406
        %v775 = vcvt.f32.s32.to.zero.pseudo %v407
        %v776 = vand.u32 %v760, 1
        %v777 = vand.u32 %v761, 1
        %v778 = vand.u32 %v762, 1
        %v779 = vand.u32 %v763, 1
        %v780 = vand.u32 %v764, 1
        %v781 = vand.u32 %v765, 1
        %v782 = vand.u32 %v766, 1
        %v783 = vand.u32 %v767, 1
        %v784 = vand.u32 %v768, 1
        %v785 = vand.u32 %v769, 1
        %v786 = vand.u32 %v770, 1
        %v787 = vand.u32 %v771, 1
        %v788 = vand.u32 %v772, 1
        %v789 = vand.u32 %v773, 1
        %v790 = vand.u32 %v774, 1
        %v791 = vand.u32 %v775, 1
        %vm792 = vcmp.eq.s32.totalorder %v776, 1
        %vm793 = vcmp.eq.s32.totalorder %v777, 1
        %vm794 = vcmp.eq.s32.totalorder %v778, 1
        %vm795 = vcmp.eq.s32.totalorder %v779, 1
        %vm796 = vcmp.eq.s32.totalorder %v780, 1
        %vm797 = vcmp.eq.s32.totalorder %v781, 1
        %vm798 = vcmp.eq.s32.totalorder %v782, 1
        %vm799 = vcmp.eq.s32.totalorder %v783, 1
        %vm800 = vcmp.eq.s32.totalorder %v784, 1
        %vm801 = vcmp.eq.s32.totalorder %v785, 1
        %vm802 = vcmp.eq.s32.totalorder %v786, 1
        %vm803 = vcmp.eq.s32.totalorder %v787, 1
        %vm804 = vcmp.eq.s32.totalorder %v788, 1
        %vm805 = vcmp.eq.s32.totalorder %v789, 1
        %vm806 = vcmp.eq.s32.totalorder %v790, 1
        %vm807 = vcmp.eq.s32.totalorder %v791, 1
        %v808 = vand.u32 %v760, 2
        %v809 = vand.u32 %v761, 2
        %v810 = vand.u32 %v762, 2
        %v811 = vand.u32 %v763, 2
        %v812 = vand.u32 %v764, 2
        %v813 = vand.u32 %v765, 2
        %v814 = vand.u32 %v766, 2
        %v815 = vand.u32 %v767, 2
        %v816 = vand.u32 %v768, 2
        %v817 = vand.u32 %v769, 2
        %v818 = vand.u32 %v770, 2
        %v819 = vand.u32 %v771, 2
        %v820 = vand.u32 %v772, 2
        %v821 = vand.u32 %v773, 2
        %v822 = vand.u32 %v774, 2
        %v823 = vand.u32 %v775, 2
        %vm824 = vcmp.eq.s32.totalorder %v808, 2
        %vm825 = vcmp.eq.s32.totalorder %v809, 2
        %vm826 = vcmp.eq.s32.totalorder %v810, 2
        %vm827 = vcmp.eq.s32.totalorder %v811, 2
        %vm828 = vcmp.eq.s32.totalorder %v812, 2
        %vm829 = vcmp.eq.s32.totalorder %v813, 2
        %vm830 = vcmp.eq.s32.totalorder %v814, 2
        %vm831 = vcmp.eq.s32.totalorder %v815, 2
        %vm832 = vcmp.eq.s32.totalorder %v816, 2
        %vm833 = vcmp.eq.s32.totalorder %v817, 2
        %vm834 = vcmp.eq.s32.totalorder %v818, 2
        %vm835 = vcmp.eq.s32.totalorder %v819, 2
        %vm836 = vcmp.eq.s32.totalorder %v820, 2
        %vm837 = vcmp.eq.s32.totalorder %v821, 2
        %vm838 = vcmp.eq.s32.totalorder %v822, 2
        %vm839 = vcmp.eq.s32.totalorder %v823, 2
        %v840 = vsel %vm792, %v744, %v616
        %v841 = vsel %vm793, %v745, %v617
        %v842 = vsel %vm794, %v746, %v618
        %v843 = vsel %vm795, %v747, %v619
        %v844 = vsel %vm796, %v748, %v620
        %v845 = vsel %vm797, %v749, %v621
        %v846 = vsel %vm798, %v750, %v622
        %v847 = vsel %vm799, %v751, %v623
        %v848 = vsel %vm800, %v752, %v624
        %v849 = vsel %vm801, %v753, %v625
        %v850 = vsel %vm802, %v754, %v626
        %v851 = vsel %vm803, %v755, %v627
        %v852 = vsel %vm804, %v756, %v628
        %v853 = vsel %vm805, %v757, %v629
        %v854 = vsel %vm806, %v758, %v630
        %v855 = vsel %vm807, %v759, %v631
        %v856 = vsel %vm792, %v616, %v744
        %v857 = vsel %vm793, %v617, %v745
        %v858 = vsel %vm794, %v618, %v746
        %v859 = vsel %vm795, %v619, %v747
        %v860 = vsel %vm796, %v620, %v748
        %v861 = vsel %vm797, %v621, %v749
        %v862 = vsel %vm798, %v622, %v750
        %v863 = vsel %vm799, %v623, %v751
        %v864 = vsel %vm800, %v624, %v752
        %v865 = vsel %vm801, %v625, %v753
        %v866 = vsel %vm802, %v626, %v754
        %v867 = vsel %vm803, %v627, %v755
        %v868 = vsel %vm804, %v628, %v756
        %v869 = vsel %vm805, %v629, %v757
        %v870 = vsel %vm806, %v630, %v758
        %v871 = vsel %vm807, %v631, %v759
        %v872 = vsub.f32 0.0, %v840
        %v873 = vsub.f32 0.0, %v841
        %v874 = vsub.f32 0.0, %v842
        %v875 = vsub.f32 0.0, %v843
        %v876 = vsub.f32 0.0, %v844
        %v877 = vsub.f32 0.0, %v845
        %v878 = vsub.f32 0.0, %v846
        %v879 = vsub.f32 0.0, %v847
        %v880 = vsub.f32 0.0, %v848
        %v881 = vsub.f32 0.0, %v849
        %v882 = vsub.f32 0.0, %v850
        %v883 = vsub.f32 0.0, %v851
        %v884 = vsub.f32 0.0, %v852
        %v885 = vsub.f32 0.0, %v853
        %v886 = vsub.f32 0.0, %v854
        %v887 = vsub.f32 0.0, %v855
        %v888 = vsel %vm824, %v872, %v840
        %v889 = vsel %vm825, %v873, %v841
        %v890 = vsel %vm826, %v874, %v842
        %v891 = vsel %vm827, %v875, %v843
        %v892 = vsel %vm828, %v876, %v844
        %v893 = vsel %vm829, %v877, %v845
        %v894 = vsel %vm830, %v878, %v846
        %v895 = vsel %vm831, %v879, %v847
        %v896 = vsel %vm832, %v880, %v848
        %v897 = vsel %vm833, %v881, %v849
        %v898 = vsel %vm834, %v882, %v850
        %v899 = vsel %vm835, %v883, %v851
        %v900 = vsel %vm836, %v884, %v852
        %v901 = vsel %vm837, %v885, %v853
        %v902 = vsel %vm838, %v886, %v854
        %v903 = vsel %vm839, %v887, %v855
        %vm904 = vmxor %vm792, %vm824
        %vm905 = vmxor %vm793, %vm825
        %vm906 = vmxor %vm794, %vm826
        %vm907 = vmxor %vm795, %vm827
        %vm908 = vmxor %vm796, %vm828
        %vm909 = vmxor %vm797, %vm829
        %vm910 = vmxor %vm798, %vm830
        %vm911 = vmxor %vm799, %vm831
        %vm912 = vmxor %vm800, %vm832
        %vm913 = vmxor %vm801, %vm833
        %vm914 = vmxor %vm802, %vm834
        %vm915 = vmxor %vm803, %vm835
        %vm916 = vmxor %vm804, %vm836
        %vm917 = vmxor %vm805, %vm837
        %vm918 = vmxor %vm806, %vm838
        %vm919 = vmxor %vm807, %vm839
        %v920 = vsub.f32 0.0, %v856
        %v921 = vsub.f32 0.0, %v857
        %v922 = vsub.f32 0.0, %v858
        %v923 = vsub.f32 0.0, %v859
        %v924 = vsub.f32 0.0, %v860
        %v925 = vsub.f32 0.0, %v861
        %v926 = vsub.f32 0.0, %v862
        %v927 = vsub.f32 0.0, %v863
        %v928 = vsub.f32 0.0, %v864
        %v929 = vsub.f32 0.0, %v865
        %v930 = vsub.f32 0.0, %v866
        %v931 = vsub.f32 0.0, %v867
        %v932 = vsub.f32 0.0, %v868
        %v933 = vsub.f32 0.0, %v869
        %v934 = vsub.f32 0.0, %v870
        %v935 = vsub.f32 0.0, %v871
        %v936 = vsel %vm904, %v920, %v856
        %v937 = vsel %vm905, %v921, %v857
        %v938 = vsel %vm906, %v922, %v858
        %v939 = vsel %vm907, %v923, %v859
        %v940 = vsel %vm908, %v924, %v860
        %v941 = vsel %vm909, %v925, %v861
        %v942 = vsel %vm910, %v926, %v862
        %v943 = vsel %vm911, %v927, %v863
        %v944 = vsel %vm912, %v928, %v864
        %v945 = vsel %vm913, %v929, %v865
        %v946 = vsel %vm914, %v930, %v866
        %v947 = vsel %vm915, %v931, %v867
        %v948 = vsel %vm916, %v932, %v868
        %v949 = vsel %vm917, %v933, %v869
        %v950 = vsel %vm918, %v934, %v870
        %v951 = vsel %vm919, %v935, %v871
        %952 = vst [vmem:[%s137] sm:$0xff] %v888
        %953 = vst [vmem:[%s137 + $0x10] sm:$0xff] %v889
        %954 = vst [vmem:[%s137 + $0x20] sm:$0xff] %v890
        %955 = vst [vmem:[%s137 + $0x30] sm:$0xff] %v891
        %956 = vst [vmem:[%s137 + $0x40] sm:$0xff] %v892
        %957 = vst [vmem:[%s137 + $0x50] sm:$0xff] %v893
        %958 = vst [vmem:[%s137 + $0x60] sm:$0xff] %v894
        %959 = vst [vmem:[%s137 + $0x70] sm:$0xff] %v895
        %960 = vst [vmem:[%s137 + $0x80] sm:$0xff] %v896
        %961 = vst [vmem:[%s137 + $0x90] sm:$0xff] %v897
        %962 = vst [vmem:[%s137 + $0xa0] sm:$0xff] %v898
        %963 = vst [vmem:[%s137 + $0xb0] sm:$0xff] %v899
        %964 = vst [vmem:[%s137 + $0xc0] sm:$0xff] %v900
        %965 = vst [vmem:[%s137 + $0xd0] sm:$0xff] %v901
        %966 = vst [vmem:[%s137 + $0xe0] sm:$0xff] %v902
        %967 = vst [vmem:[%s137 + $0xf0] sm:$0xff] %v903
        %968 = vst [vmem:[%s137 + $0x8] sm:$0xff] %v936
        %969 = vst [vmem:[%s137 + $0x18] sm:$0xff] %v937
        %970 = vst [vmem:[%s137 + $0x28] sm:$0xff] %v938
        %971 = vst [vmem:[%s137 + $0x38] sm:$0xff] %v939
        %972 = vst [vmem:[%s137 + $0x48] sm:$0xff] %v940
        %973 = vst [vmem:[%s137 + $0x58] sm:$0xff] %v941
        %974 = vst [vmem:[%s137 + $0x68] sm:$0xff] %v942
        %975 = vst [vmem:[%s137 + $0x78] sm:$0xff] %v943
        %976 = vst [vmem:[%s137 + $0x88] sm:$0xff] %v944
        %977 = vst [vmem:[%s137 + $0x98] sm:$0xff] %v945
        %978 = vst [vmem:[%s137 + $0xa8] sm:$0xff] %v946
        %979 = vst [vmem:[%s137 + $0xb8] sm:$0xff] %v947
        %980 = vst [vmem:[%s137 + $0xc8] sm:$0xff] %v948
        %981 = vst [vmem:[%s137 + $0xd8] sm:$0xff] %v949
        %982 = vst [vmem:[%s137 + $0xe8] sm:$0xff] %v950
        %983 = vst [vmem:[%s137 + $0xf8] sm:$0xff] %v951
        %s984 = sand.u32 %s71, 1
        %s985 = scalar_lea.sflag [#allocation3], %s984
        %s986 = sand.u32 %s71, 1
        %s987 = smul.addr %s986, 256
        %s988 = scalar_lea.vmem [#allocation2], %s987
        // Predicated region
        $region29: #{tpu_custom_call.1} parent=27 // pred_check
          %p989 = pneg %p81
        $region30: #{tpu_custom_call.1} parent=27 // pred_check_branch
          %991 = sbr.rel (%p989) target = $region32
        $region31: #{tpu_custom_call.1} parent=27 // pred_region
          %s992 = smul.u32 16, %s16
          %s994 = ssub.s32 4096, 4096
          %995 = vsyncadd %s985, %s994
          %s996 = smul.addr %s992, 2
          %s997 = smul.addr %s996, 128
          %s998 = scalar_lea.hbm %s2, %s997
          %s999 = sshll.u32 %s988, 4
          %s1000 = int_to_ptr.vmem [resolvable:$true] %s999
          %1005 = dma.vmem_to_hbm [thread:$0]  %s1000, 4096, %s998, %s985, 256, 256, 16
        $region32: #{tpu_custom_call.1} parent=27 // pred_fallthru
          _
      $region28: #{tpu_custom_call.1} parent=5 // pred_fallthru
        _
      %p1006 = scmp.le.s32.totalorder 2, %s11
      // Predicated region
      $region33: #{tpu_custom_call.1} parent=5 // pred_check
        %p1007 = pneg %p1006
      $region34: #{tpu_custom_call.1} parent=5 // pred_check_branch
        %1009 = sbr.rel (%p1007) target = $region36
      $region35: #{tpu_custom_call.1} parent=5 // pred_region
        %s1010 = ssub.s32 %s11, 2
        // Predicated region
        $region37: #{tpu_custom_call.1} parent=35 // pred_check
          %p1011 = pneg %p87
        $region38: #{tpu_custom_call.1} parent=35 // pred_check_branch
          %1013 = sbr.rel (%p1011) target = $region40
        $region39: #{tpu_custom_call.1} parent=35 // pred_region
          %s1014 = sand.u32 %s72, 1
          %s1015 = scalar_lea.sflag [#allocation3], %s1014
          %s1016 = sand.u32 %s72, 1
          %s1017 = smul.addr %s1016, 256
          %s1018 = scalar_lea.vmem [#allocation2], %s1017
          %1019 = dma.done %s1015, 4096
        $region40: #{tpu_custom_call.1} parent=35 // pred_fallthru
          _
      $region36: #{tpu_custom_call.1} parent=5 // pred_fallthru
        _
    $region6: #{tpu_custom_call.1} parent=1 // loop_footer
      %s15 = sadd.s32 1, %s11
    $region7: #{tpu_custom_call.1} parent=1 // loop_footer_branch
      %10 = sbr.rel target = $region3
    $region8: #{tpu_custom_call.1} parent=1 // loop_exit
      _
    %1020 = vsyncpa [#allocation3], 1
    %s1021 = scalar_lea.sflag [#allocation3], 1
    %1022 = vsyncpa %s1021, 1

</llo_original>
